<compile_context>
chip_gen: v7x
topology: tpu7x:2x2x1
jax: 0.10.0
libtpu: 0.0.40
codegen_flags: <defaults>
</compile_context>

<pallas_src>
import functools
import math

import jax
import jax.numpy as jnp
from jax.experimental import pallas as pl
from jax.experimental.pallas import tpu as pltpu


def _round_up(x, m):
    return ((x + m - 1) // m) * m


def _log_transform_kernel(x_ref, mask_ref, o_ref, *, eps, inv_log_base):
    """Masked elementwise log on one (tile_n, tile_d) block.

    out = where(mask, log(max(x, eps)) * inv_log_base, x)
    Sub-f32 floats are upcast to f32 for the compute and cast back on the
    store (free under the HBM roofline; EUP/VPU slots are idle filler here).
    """
    x = x_ref[...]                                      # (tile_n, tile_d)
    m = mask_ref[...]                                   # (1, tile_d) int32
    xf = x.astype(jnp.float32)
    logged = jnp.log(jnp.maximum(xf, jnp.asarray(eps, jnp.float32)))
    if inv_log_base != 1.0:                             # static trace-time branch
        logged = logged * jnp.asarray(inv_log_base, jnp.float32)
    o_ref[...] = jnp.where(m != 0, logged, xf).astype(o_ref.dtype)


def log_transform_ref(x, mask, base=None, eps=1e-6):
    """Pure-JAX reference mirroring the PyTorch forward (f32 compute)."""
    xf = x.astype(jnp.float32)
    logged = jnp.log(jnp.maximum(xf, jnp.asarray(eps, jnp.float32)))
    if base is not None and float(base) > 0.0:
        logged = logged * jnp.asarray(1.0 / math.log(float(base)), jnp.float32)
    return jnp.where(jnp.asarray(mask, bool)[None, :], logged, xf).astype(x.dtype)


def _pick_target_block_bytes():
    """Generation-aware block budget.

    v7x-class cores (64 MiB VMEM, ~3.2 TB/s HBM per TC): each grid step is
    ~2.5x shorter than v6e, so the fixed ~0.35 us/step overhead is a larger
    fraction -> use bigger (~6 MiB) blocks; 2*in + 2*out double buffers stay
    well under the 64 MiB ceiling.  v5e/v6e (128 MiB VMEM): ~4 MiB blocks
    already sit at ~85% of the HBM roofline.
    """
    try:
        vmem = int(pltpu.get_tpu_info().vmem_capacity_bytes)
        if vmem <= (64 << 20):
            return 6 << 20
    except Exception:
        pass
    return 4 << 20


def log_transform(x, mask, base=None, eps=1e-6, *, tile_n=None, tile_d=None,
                  min_kernel_bytes=1 << 20, force_kernel=False,
                  donate_x=False):
    """Pallas implementation of LogTransform.forward.

    Args:
      x:    (N, D) float array.
      mask: (D,) bool array — features (columns) to log-transform.
      base: optional log base (None or <= 0 means natural log).
      eps:  clamp minimum before the log.
      tile_n: optional row-tile override (rounded up to the sublane multiple).
      tile_d: optional feature-tile override (rounded to a multiple of 128
              unless >= D, in which case the full D is used untiled).
      min_kernel_bytes: below this array size, use the fused XLA path.
      force_kernel: always run the Pallas kernel (used by the self-test).
      donate_x: alias the output onto x (input_output_aliases={0: 0}); only
                use when the caller no longer needs x.
    Returns:
      (N, D) array, same dtype as x.
    """
    N, D = x.shape
    assert mask.shape == (D,), "mask must have one entry per feature (column)"

    itemsize = jnp.dtype(x.dtype).itemsize

    # Tiny inputs: per-grid-step + launch overhead dominates; fused XLA wins.
    if not force_kernel and N * D * itemsize < min_kernel_bytes:
        return log_transform_ref(x, mask, base=base, eps=eps)

    if base is not None and float(base) > 0.0:
        inv_log_base = 1.0 / math.log(float(base))   # host-side, no device sync
    else:
        inv_log_base = 1.0

    # Sublane multiple by dtype packing: 8 for 4-byte, 16 for 2-byte, 32 for 1-byte.
    sub = {4: 8, 2: 16, 1: 32}.get(itemsize, 8)
    target_block_bytes = _pick_target_block_bytes()

    # Feature (lane) tiling.  Default: keep the FULL D as the block's last dim
    # (exempt from the 128-lane divisibility rule) -> no HBM pad/slice round
    # trip for ragged D.  Only tile D (multiples of 128) when even a `sub`-row
    # block would blow the block budget (very wide feature dims).
    if tile_d is None:
        if D * sub * itemsize > 2 * target_block_bytes:
            tile_d = max(128, min(2048,
                                  (target_block_bytes // (sub * itemsize) // 128) * 128))
        else:
            tile_d = D
    tile_d = int(tile_d)
    if tile_d >= D:
        tile_d = D                                    # full dim: no 128 constraint
    else:
        tile_d = max(128, (tile_d // 128) * 128)      # (8,128) rule on tiled lanes

    # Row tiling: byte-based cap (up to 8192 rows for narrow D), no hard 1024 cap.
    if tile_n is None:
        rows = max(sub, target_block_bytes // (tile_d * itemsize))
        tile_n = min((rows // sub) * sub, 8192)
        # Keep a handful of grid steps when the array allows it so
        # dimension_semantics=("parallel", ...) can load-balance v7x's 2 TCs.
        if pl.cdiv(N, tile_n) * pl.cdiv(D, tile_d) < 4:
            tile_n = max(sub, _round_up(pl.cdiv(N, 4), sub))
    tile_n = max(sub, _round_up(int(tile_n), sub))
    tile_n = min(tile_n, _round_up(N, sub))

    block_bytes = tile_n * tile_d * itemsize
    # 2x double-buffered input + 2x output + mask + slack; cap below v7x's
    # 64 MiB physical VMEM so Mosaic keeps scratch / pipelining headroom.
    vmem_limit = int(min(48 << 20, max(16 << 20, 5 * block_bytes + (2 << 20))))

    mask_i32 = jnp.asarray(mask, jnp.int32).reshape(1, D)

    kernel = functools.partial(
        _log_transform_kernel, eps=float(eps), inv_log_base=inv_log_base)

    grid = (pl.cdiv(N, tile_n), pl.cdiv(D, tile_d))
    out = pl.pallas_call(
        kernel,
        out_shape=jax.ShapeDtypeStruct((N, D), x.dtype),
        grid=grid,
        in_specs=[
            pl.BlockSpec((tile_n, tile_d), lambda i, j: (i, j)),
            pl.BlockSpec((1, tile_d), lambda i, j: (0, j)),
        ],
        out_specs=pl.BlockSpec((tile_n, tile_d), lambda i, j: (i, j)),
        compiler_params=pltpu.CompilerParams(
            dimension_semantics=("parallel", "parallel"),
            vmem_limit_bytes=vmem_limit,
        ),
        input_output_aliases=({0: 0} if donate_x else {}),
    )(x, mask_i32)
    return out


if __name__ == "__main__":
    key = jax.random.PRNGKey(0)
    k1, k2, k3 = jax.random.split(key, 3)

    # --- Test 1: small demo (N=8, D=32), log base 2, f32 ---
    x1 = jax.random.normal(k1, (8, 32), dtype=jnp.float32) * 2.0
    m1 = (jnp.arange(32) % 2 == 0)
    o1 = jax.block_until_ready(
        log_transform(x1, m1, base=2.0, eps=1e-6, force_kernel=True))
    e1 = log_transform_ref(x1, m1, base=2.0, eps=1e-6)
    assert o1.shape == x1.shape and o1.dtype == x1.dtype
    assert jnp.allclose(o1, e1, rtol=1e-5, atol=1e-5), "test1 mismatch"

    # --- Test 2: ragged lane tail (D=160, not a multiple of 128), multi-step
    #     row grid, natural log.  No pad/slice: block lane dim is the full D. ---
    x2 = jax.random.normal(k2, (256, 160), dtype=jnp.float32) * 3.0
    m2 = (jnp.arange(160) % 3 != 0)
    o2 = jax.block_until_ready(
        log_transform(x2, m2, base=None, eps=1e-6, tile_n=64, force_kernel=True))
    e2 = log_transform_ref(x2, m2, base=None, eps=1e-6)
    assert o2.shape == x2.shape and o2.dtype == x2.dtype
    assert jnp.allclose(o2, e2, rtol=1e-5, atol=1e-5), "test2 mismatch"

    # --- Test 3: bf16 (sublane multiple 16), log base 10, f32 in-kernel compute ---
    x3 = (jax.random.normal(k3, (96, 200), dtype=jnp.float32) * 2.0).astype(jnp.bfloat16)
    m3 = (jnp.arange(200) % 2 == 1)
    o3 = jax.block_until_ready(
        log_transform(x3, m3, base=10.0, eps=1e-6, tile_n=32, force_kernel=True))
    e3 = log_transform_ref(x3, m3, base=10.0, eps=1e-6)
    assert o3.shape == x3.shape and o3.dtype == jnp.bfloat16
    assert jnp.allclose(o3.astype(jnp.float32), e3.astype(jnp.float32),
                        rtol=5e-2, atol=5e-2), "test3 mismatch"

    print("KERNEL_OK")
</pallas_src>

<mosaic_0001>
module attributes {stable_mosaic.version = 11 : i64} {
  func.func @_log_transform_kernel(%arg0: i32, %arg1: i32, %arg2: memref<8x32xf32, #tpu.memory_space<vmem>>, %arg3: memref<1x32xi32, #tpu.memory_space<vmem>>, %arg4: memref<8x32xf32, #tpu.memory_space<vmem>>) attributes {dimension_semantics = [#tpu.dimension_semantics<parallel>, #tpu.dimension_semantics<parallel>], iteration_bounds = array<i64: 1, 1>, scalar_prefetch = 0 : i64, scratch_operands = 0 : i64, tpu.core_type = #tpu.core_type<tc>, window_params = [{transform_indices = @transform_0, window_bounds = array<i64: 8, 32>}, {transform_indices = @transform_1, window_bounds = array<i64: 1, 32>}, {transform_indices = @transform_2, window_bounds = array<i64: 8, 32>}]} {
    %c0 = arith.constant 0 : index
    %c0_0 = arith.constant 0 : index
    %0 = vector.load %arg2[%c0, %c0_0] : memref<8x32xf32, #tpu.memory_space<vmem>>, vector<8x32xf32>
    %c0_1 = arith.constant 0 : index
    %c0_2 = arith.constant 0 : index
    %1 = vector.load %arg3[%c0_1, %c0_2] : memref<1x32xi32, #tpu.memory_space<vmem>>, vector<1x32xi32>
    %cst = arith.constant 9.99999997E-7 : f32
    %2 = vector.broadcast %cst : f32 to vector<8x32xf32>
    %3 = arith.maximumf %0, %2 : vector<8x32xf32>
    %4 = math.log %3 : vector<8x32xf32>
    %cst_3 = arith.constant 1.44269502 : f32
    %5 = vector.broadcast %cst_3 : f32 to vector<8x32xf32>
    %6 = arith.mulf %4, %5 : vector<8x32xf32>
    %c0_i32 = arith.constant 0 : i32
    %7 = vector.broadcast %c0_i32 : i32 to vector<1x32xi32>
    %8 = arith.cmpi ne, %1, %7 : vector<1x32xi32>
    %9 = vector.shape_cast %8 : vector<1x32xi1> to vector<1x32xi1>
    %10 = vector.broadcast %9 : vector<1x32xi1> to vector<8x32xi1>
    %11 = arith.select %10, %6, %0 : vector<8x32xi1>, vector<8x32xf32>
    %c0_4 = arith.constant 0 : index
    %c0_5 = arith.constant 0 : index
    %12 = vector.load %arg4[%c0_4, %c0_5] : memref<8x32xf32, #tpu.memory_space<vmem>>, vector<8x32xf32>
    tpu.vector_store %arg4[%c0_4, %c0_5], %11 {strides = array<i32>} : memref<8x32xf32, #tpu.memory_space<vmem>>, vector<8x32xf32>,
    return
  }
  func.func @transform_0(%arg0: i32, %arg1: i32) -> (i32, i32) {
    %c0_i32 = arith.constant 0 : i32
    return %arg0, %arg1 : i32, i32
  }
  func.func @transform_1(%arg0: i32, %arg1: i32) -> (i32, i32) {
    %c0_i32 = arith.constant 0 : i32
    %c0_i32_0 = arith.constant 0 : i32
    return %c0_i32, %arg1 : i32, i32
  }
  func.func @transform_2(%arg0: i32, %arg1: i32) -> (i32, i32) {
    %c0_i32 = arith.constant 0 : i32
    return %arg0, %arg1 : i32, i32
  }
}

</mosaic_0001>

<llo_original>
// kernel: tpu_custom_call.1
$region0: #{tpu_custom_call.1}
  #allocation0 [shape = 'u32[]', space=smem, size = 0x4, offset = 0x4, fixed_abs, tag = 'smem constant byte address 0x4 - core index']
  #allocation1 [shape = 'u32[144,128]{1,0:T(1,128)}', space=vmem, size = 0x12000, scoped, tag = 'internal scratch']
  %s0 = inlined_call_operand.hbm [shape: f32[8,32], index: 0, kind: input, shape index: {}]
  %s1 = inlined_call_operand.vmem [shape: s32[1,32], index: 1, kind: input, shape index: {}]
  %s2 = inlined_call_operand.hbm [shape: f32[8,32], index: 2, kind: output, shape index: {}]
  %s3 = sld [smem:[#allocation0]]
  $region22: #{tpu_custom_call.1} parent=0
    _
  %s5 = ssub.s32 1, %s3
  %s6 = scalar_select 0, %s5, %s3
  $region1: #{tpu_custom_call.1} parent=0
    #allocation2 [shape = 'u8[4096]{0}', space=vmem, size = 0x1000, scoped, tag = 'input window, operand 0, single buffered']
    #allocation3 [shape = 's32[1]{0}', space=sflag, size = 0x4, scoped, tag = 'scoped memory for tpu_custom_call.1']
    #allocation4 [shape = 's32[1]{0}', space=sflag, size = 0x4, scoped, tag = 'scoped memory for tpu_custom_call.1']
    #allocation5 [shape = 'u8[4096]{0}', space=vmem, size = 0x1000, scoped, tag = 'output window, operand 0, single buffered']
    %7 = vsyncpa [#allocation3], 0
    %8 = vsyncpa [#allocation4], 0
    // Predicated region
    $region2: #{tpu_custom_call.1} parent=1 // pred_check
      _
    $region3: #{tpu_custom_call.1} parent=1 // pred_check_branch
      %10 = sbr.rel (0) target = $region5
    $region4: #{tpu_custom_call.1} parent=1 // pred_region
      %s12 = ssub.s32 128, 128
      %13 = vsyncadd [#allocation3], %s12
      %s15 = sshll.u32 [#allocation2], 4
      %s16 = int_to_ptr.vmem [resolvable:$true] %s15
      %18 = dma.hbm_to_vmem [thread:$0]  %s0, 128, %s16, [#allocation3]
    $region5: #{tpu_custom_call.1} parent=1 // pred_fallthru
      _
    // Predicated region
    $region6: #{tpu_custom_call.1} parent=1 // pred_check
      _
    $region7: #{tpu_custom_call.1} parent=1 // pred_check_branch
      %20 = sbr.rel (0) target = $region9
    $region8: #{tpu_custom_call.1} parent=1 // pred_region
      _
    $region9: #{tpu_custom_call.1} parent=1 // pred_fallthru
      _
    // Predicated region
    $region10: #{tpu_custom_call.1} parent=1 // pred_check
      _
    $region11: #{tpu_custom_call.1} parent=1 // pred_check_branch
      %22 = sbr.rel (0) target = $region13
    $region12: #{tpu_custom_call.1} parent=1 // pred_region
      %23 = dma.done [#allocation3], 128
    $region13: #{tpu_custom_call.1} parent=1 // pred_fallthru
      _
    %v24 = vld [vmem:[#allocation2] sm:$0xff]
    %v25 = vld [vmem:[%s1] sm:$0x1]
    %v26 = vmax.f32 %v24, 1e-06
    %v27 = vlog2.pop %v26
    %v28 = vmul.f32 %v27, 0.6931472
    %v29 = vmul.f32 %v28, 1.442695
    %vm30 = vcmp.ne.s32.totalorder %v25, 0
    %v31 = vsel %vm30, 1, 0
    %v32 = vlaneseq
    %v33 = vshrl.u32 %v32, 7
    %v34 = vsub.s32 0, %v33
    %v35 = vrot.slane %v31, %v34
    %vm36 = vcmp.eq.s32.totalorder %v35, 1
    %v37 = vsel %vm36, %v29, %v24
    %vm38 = vcmask 261120
    %39 = vst.msk [vmem:[#allocation5] sm:$0xff] %vm38, %v37
    // Predicated region
    $region14: #{tpu_custom_call.1} parent=1 // pred_check
      _
    $region15: #{tpu_custom_call.1} parent=1 // pred_check_branch
      %41 = sbr.rel (0) target = $region17
    $region16: #{tpu_custom_call.1} parent=1 // pred_region
      %s43 = ssub.s32 128, 128
      %44 = vsyncadd [#allocation4], %s43
      %s46 = sshll.u32 [#allocation5], 4
      %s47 = int_to_ptr.vmem [resolvable:$true] %s46
      %49 = dma.vmem_to_hbm [thread:$0]  %s47, 128, %s2, [#allocation4]
    $region17: #{tpu_custom_call.1} parent=1 // pred_fallthru
      _
    // Predicated region
    $region18: #{tpu_custom_call.1} parent=1 // pred_check
      _
    $region19: #{tpu_custom_call.1} parent=1 // pred_check_branch
      %51 = sbr.rel (0) target = $region21
    $region20: #{tpu_custom_call.1} parent=1 // pred_region
      %52 = dma.done [#allocation4], 128
    $region21: #{tpu_custom_call.1} parent=1 // pred_fallthru
      _
    %53 = vsyncpa [#allocation3], 1
    %54 = vsyncpa [#allocation4], 1

</llo_original>
